<compile_context>
chip_gen: v5e
topology: v5e:2x2
jax: 0.10.0
libtpu: 0.0.40
codegen_flags: <defaults>
</compile_context>

<pallas_src>
import functools

import jax
import jax.numpy as jnp
from jax import lax
from jax.experimental import pallas as pl
from jax.experimental.pallas import tpu as pltpu

MARGIN = 0.5
_NORM_EPS = 1e-12   # F.normalize eps

_SUBLANES = 8
_LANES = 128
_MAX_BLOCK_ROWS = 8192


def _cosine_loss_kernel(z1_ref, z2_ref, label_ref, out_ref, *,
                        margin, block_rows, true_rows):
    z1 = z1_ref[...]                                              # (TB, D), input dtype
    z2 = z2_ref[...]
    lab = label_ref[...].astype(jnp.float32)                      # (TB, 1)

    # Fused cosine similarity: elementwise products in the input dtype, lane
    # reductions accumulated in f32 (3 reductions total, no normalize pass).
    dot = jnp.sum(z1 * z2, axis=1, keepdims=True, dtype=jnp.float32)    # (TB, 1)
    n1sq = jnp.sum(z1 * z1, axis=1, keepdims=True, dtype=jnp.float32)   # (TB, 1)
    n2sq = jnp.sum(z2 * z2, axis=1, keepdims=True, dtype=jnp.float32)   # (TB, 1)

    inv1 = lax.rsqrt(jnp.maximum(n1sq, _NORM_EPS * _NORM_EPS))   # EUP slot
    inv2 = lax.rsqrt(jnp.maximum(n2sq, _NORM_EPS * _NORM_EPS))
    cos_sim = dot * inv1 * inv2
    cos_dist = 1.0 - cos_sim
    hinge = jnp.maximum(margin - cos_dist, 0.0)

    # Mask batch-padding rows explicitly — correct for any margin value.
    row = (lax.broadcasted_iota(jnp.int32, (block_rows, 1), 0)
           + pl.program_id(0) * block_rows)
    valid = (row < true_rows).astype(jnp.float32)
    loss = valid * (lab * cos_dist * cos_dist + (1.0 - lab) * hinge * hinge)

    # Per-tile partial sum, written to a lane-dense (8,128) block (unmasked vst).
    psum = jnp.sum(loss, keepdims=True)                           # (1, 1)
    out_ref[...] = jnp.broadcast_to(psum, (_SUBLANES, _LANES))


def _default_vmem_limit_bytes():
    # v7x has only 64 MiB VMEM per TensorCore; v5e/v6e have 128 MiB.
    try:
        kind = jax.devices()[0].device_kind.lower()
    except Exception:
        kind = ""
    if "v7" in kind:
        return 48 * 1024 * 1024
    return 96 * 1024 * 1024


def _live_bytes_per_row(d, itemsize):
    # Pipelined inputs: 2 operands x 2 buffers x itemsize per element.
    # In-kernel temporaries: up to ~3 f32-equivalent (TB, D) products / converts.
    return (4 * itemsize + 3 * 4) * d


def _pick_block_rows(b_round8, d, itemsize, vmem_limit_bytes):
    budget = int(vmem_limit_bytes * 0.75)   # headroom for label/out/compiler scratch
    tb = budget // max(_live_bytes_per_row(d, itemsize), 1)
    tb = (tb // _SUBLANES) * _SUBLANES
    tb = max(_SUBLANES, min(tb, _MAX_BLOCK_ROWS))
    # Guarantee >= 2 tiles when the batch allows it, so the "parallel" grid axis
    # actually shards across both TensorCores on v7x.
    if b_round8 >= 2 * _SUBLANES:
        tb = min(tb, (b_round8 // 2 // _SUBLANES) * _SUBLANES)
    return min(tb, b_round8)


def cosine_loss(z1, z2, label, *, margin=MARGIN, block_rows=None,
                vmem_limit_bytes=None):
    """z1, z2: (B, D) float arrays (f32 or bf16); label: (B,). Returns scalar f32."""
    B, D = z1.shape
    itemsize = jnp.dtype(z1.dtype).itemsize
    if vmem_limit_bytes is None:
        vmem_limit_bytes = _default_vmem_limit_bytes()

    # Even the minimum (8, D) tile must fit double-buffered inputs + temporaries.
    if _live_bytes_per_row(D, itemsize) * _SUBLANES > int(vmem_limit_bytes * 0.75):
        # TODO(synk): add a trailing "arbitrary" D-axis grid with (TB,1) f32 scratch
        # accumulators to support extremely large D instead of failing.
        raise ValueError(f"D={D} too large for a single-axis grid within "
                         f"{vmem_limit_bytes} bytes of VMEM")

    b_round8 = ((B + _SUBLANES - 1) // _SUBLANES) * _SUBLANES
    if block_rows is None:
        tb = _pick_block_rows(b_round8, D, itemsize, vmem_limit_bytes)
    else:
        tb = max(_SUBLANES, (int(block_rows) // _SUBLANES) * _SUBLANES)
        tb = min(tb, b_round8)

    num_tiles = (b_round8 + tb - 1) // tb
    b_pad = num_tiles * tb

    pad = b_pad - B
    label2d = label.reshape(B, 1).astype(jnp.float32)
    if pad:
        z1 = jnp.pad(z1, ((0, pad), (0, 0)))
        z2 = jnp.pad(z2, ((0, pad), (0, 0)))
        label2d = jnp.pad(label2d, ((0, pad), (0, 0)))

    cost = pl.CostEstimate(
        flops=6 * b_pad * D,
        transcendentals=2 * b_pad,
        bytes_accessed=(2 * b_pad * D * itemsize + b_pad * 4
                        + num_tiles * _SUBLANES * _LANES * 4),
    )

    out = pl.pallas_call(
        functools.partial(_cosine_loss_kernel, margin=float(margin),
                          block_rows=tb, true_rows=B),
        out_shape=jax.ShapeDtypeStruct((num_tiles * _SUBLANES, _LANES), jnp.float32),
        grid_spec=pltpu.PrefetchScalarGridSpec(
            num_scalar_prefetch=0,
            grid=(num_tiles,),
            in_specs=[
                pl.BlockSpec((tb, D), lambda i: (i, 0)),
                pl.BlockSpec((tb, D), lambda i: (i, 0)),
                pl.BlockSpec((tb, 1), lambda i: (i, 0)),
            ],
            out_specs=pl.BlockSpec((_SUBLANES, _LANES), lambda i: (i, 0)),
        ),
        compiler_params=pltpu.CompilerParams(
            dimension_semantics=("parallel",),
            vmem_limit_bytes=int(vmem_limit_bytes),
        ),
        cost_estimate=cost,
    )(z1, z2, label2d)

    partials = out.reshape(num_tiles, _SUBLANES, _LANES)[:, 0, 0]   # one value per tile
    return jnp.sum(partials) / B                                    # mean over true B


def _reference(z1, z2, label, margin=MARGIN):
    z1 = z1.astype(jnp.float32)
    z2 = z2.astype(jnp.float32)
    z1n = z1 / jnp.maximum(jnp.linalg.norm(z1, axis=1, keepdims=True), _NORM_EPS)
    z2n = z2 / jnp.maximum(jnp.linalg.norm(z2, axis=1, keepdims=True), _NORM_EPS)
    dot = jnp.sum(z1n * z2n, axis=1)
    denom = jnp.maximum(jnp.linalg.norm(z1n, axis=1) * jnp.linalg.norm(z2n, axis=1),
                        1e-8)
    cos_dist = 1.0 - dot / denom
    hinge = jnp.maximum(margin - cos_dist, 0.0)
    loss = label * cos_dist ** 2 + (1.0 - label) * hinge ** 2
    return jnp.mean(loss)


if __name__ == "__main__":
    key = jax.random.PRNGKey(0)
    k1, k2, k3 = jax.random.split(key, 3)

    # Small pair-embedding shapes: (B, D) = (8, 32)
    B, D = 8, 32
    z1 = jax.random.normal(k1, (B, D), dtype=jnp.float32)
    z2 = jax.random.normal(k2, (B, D), dtype=jnp.float32)
    label = jax.random.bernoulli(k3, 0.5, (B,)).astype(jnp.float32)

    out = cosine_loss(z1, z2, label)
    jax.block_until_ready(out)
    ref = _reference(z1, z2, label)
    assert jnp.allclose(out, ref, atol=1e-5, rtol=1e-5), (out, ref)

    # Multi-tile grid + batch padding (B not a multiple of 8), forced small tiles.
    k4, k5, k6 = jax.random.split(jax.random.PRNGKey(1), 3)
    B2, D2 = 20, 96
    z1b = jax.random.normal(k4, (B2, D2), dtype=jnp.float32)
    z2b = jax.random.normal(k5, (B2, D2), dtype=jnp.float32)
    labelb = jax.random.bernoulli(k6, 0.5, (B2,)).astype(jnp.float32)
    out2 = cosine_loss(z1b, z2b, labelb, block_rows=8)   # 3 tiles + padded rows
    jax.block_until_ready(out2)
    ref2 = _reference(z1b, z2b, labelb)
    assert jnp.allclose(out2, ref2, atol=1e-5, rtol=1e-5), (out2, ref2)

    # margin > 1 with padded rows exercises the explicit padding mask.
    out3 = cosine_loss(z1b, z2b, labelb, margin=1.5, block_rows=8)
    jax.block_until_ready(out3)
    ref3 = _reference(z1b, z2b, labelb, margin=1.5)
    assert jnp.allclose(out3, ref3, atol=1e-5, rtol=1e-5), (out3, ref3)

    print("KERNEL_OK")
</pallas_src>

<mosaic_0001>
module attributes {stable_mosaic.version = 11 : i64} {
  func.func @_cosine_loss_kernel(%arg0: i32, %arg1: memref<8x32xf32, #tpu.memory_space<vmem>>, %arg2: memref<8x32xf32, #tpu.memory_space<vmem>>, %arg3: memref<8x1xf32, #tpu.memory_space<vmem>>, %arg4: memref<8x128xf32, #tpu.memory_space<vmem>>) attributes {dimension_semantics = [#tpu.dimension_semantics<parallel>], iteration_bounds = array<i64: 1>, scalar_prefetch = 0 : i64, scratch_operands = 0 : i64, tpu.core_type = #tpu.core_type<tc>, window_params = [{transform_indices = @transform_0, window_bounds = array<i64: 8, 32>}, {transform_indices = @transform_1, window_bounds = array<i64: 8, 32>}, {transform_indices = @transform_2, window_bounds = array<i64: 8, 1>}, {transform_indices = @transform_3, window_bounds = array<i64: 8, 128>}]} {
    %c0 = arith.constant 0 : index
    %c0_0 = arith.constant 0 : index
    %0 = vector.load %arg1[%c0, %c0_0] : memref<8x32xf32, #tpu.memory_space<vmem>>, vector<8x32xf32>
    %c0_1 = arith.constant 0 : index
    %c0_2 = arith.constant 0 : index
    %1 = vector.load %arg2[%c0_1, %c0_2] : memref<8x32xf32, #tpu.memory_space<vmem>>, vector<8x32xf32>
    %c0_3 = arith.constant 0 : index
    %c0_4 = arith.constant 0 : index
    %2 = vector.load %arg3[%c0_3, %c0_4] : memref<8x1xf32, #tpu.memory_space<vmem>>, vector<8x1xf32>
    %3 = arith.mulf %0, %1 : vector<8x32xf32>
    %cst = arith.constant dense<0.000000e+00> : vector<8xf32>
    %4 = vector.multi_reduction <add>, %3, %cst [1] : vector<8x32xf32> to vector<8xf32>
    %5 = vector.shape_cast %4 : vector<8xf32> to vector<8x1xf32>
    %6 = arith.mulf %0, %0 : vector<8x32xf32>
    %cst_5 = arith.constant dense<0.000000e+00> : vector<8xf32>
    %7 = vector.multi_reduction <add>, %6, %cst_5 [1] : vector<8x32xf32> to vector<8xf32>
    %8 = vector.shape_cast %7 : vector<8xf32> to vector<8x1xf32>
    %9 = arith.mulf %1, %1 : vector<8x32xf32>
    %cst_6 = arith.constant dense<0.000000e+00> : vector<8xf32>
    %10 = vector.multi_reduction <add>, %9, %cst_6 [1] : vector<8x32xf32> to vector<8xf32>
    %11 = vector.shape_cast %10 : vector<8xf32> to vector<8x1xf32>
    %cst_7 = arith.constant 1.000000e-24 : f32
    %12 = vector.broadcast %cst_7 : f32 to vector<8x1xf32>
    %13 = arith.maximumf %8, %12 : vector<8x1xf32>
    %14 = math.rsqrt %13 : vector<8x1xf32>
    %cst_8 = arith.constant 1.000000e-24 : f32
    %15 = vector.broadcast %cst_8 : f32 to vector<8x1xf32>
    %16 = arith.maximumf %11, %15 : vector<8x1xf32>
    %17 = math.rsqrt %16 : vector<8x1xf32>
    %18 = arith.mulf %5, %14 : vector<8x1xf32>
    %19 = arith.mulf %18, %17 : vector<8x1xf32>
    %cst_9 = arith.constant 1.000000e+00 : f32
    %20 = vector.broadcast %cst_9 : f32 to vector<8x1xf32>
    %21 = arith.subf %20, %19 : vector<8x1xf32>
    %cst_10 = arith.constant 5.000000e-01 : f32
    %22 = vector.broadcast %cst_10 : f32 to vector<8x1xf32>
    %23 = arith.subf %22, %21 : vector<8x1xf32>
    %cst_11 = arith.constant 0.000000e+00 : f32
    %24 = vector.broadcast %cst_11 : f32 to vector<8x1xf32>
    %25 = arith.maximumf %23, %24 : vector<8x1xf32>
    %26 = tpu.iota {dimensions = array<i32: 0>} : vector<8x1xi32>
    %c8_i32 = arith.constant 8 : i32
    %27 = arith.muli %arg0, %c8_i32 : i32
    %28 = vector.broadcast %27 : i32 to vector<8x1xi32>
    %29 = arith.addi %26, %28 : vector<8x1xi32>
    %c8_i32_12 = arith.constant 8 : i32
    %30 = vector.broadcast %c8_i32_12 : i32 to vector<8x1xi32>
    %31 = arith.cmpi slt, %29, %30 : vector<8x1xi32>
    %32 = arith.extui %31 : vector<8x1xi1> to vector<8x1xi32>
    %33 = arith.sitofp %32 : vector<8x1xi32> to vector<8x1xf32>
    %34 = arith.mulf %2, %21 : vector<8x1xf32>
    %35 = arith.mulf %34, %21 : vector<8x1xf32>
    %cst_13 = arith.constant 1.000000e+00 : f32
    %36 = vector.broadcast %cst_13 : f32 to vector<8x1xf32>
    %37 = arith.subf %36, %2 : vector<8x1xf32>
    %38 = arith.mulf %37, %25 : vector<8x1xf32>
    %39 = arith.mulf %38, %25 : vector<8x1xf32>
    %40 = arith.addf %35, %39 : vector<8x1xf32>
    %41 = arith.mulf %33, %40 : vector<8x1xf32>
    %42 = vector.shape_cast %41 : vector<8x1xf32> to vector<1x8x1xf32>
    %cst_14 = arith.constant dense<0.000000e+00> : vector<1xf32>
    %43 = vector.multi_reduction <add>, %42, %cst_14 [1, 2] : vector<1x8x1xf32> to vector<1xf32>
    %44 = vector.shape_cast %43 : vector<1xf32> to vector<1x1x1xf32>
    %45 = vector.extract %44[0, 0, 0] : f32 from vector<1x1x1xf32>
    %46 = vector.broadcast %45 : f32 to vector<1x1xf32>
    %47 = vector.shape_cast %46 : vector<1x1xf32> to vector<1x1xf32>
    %48 = vector.broadcast %47 : vector<1x1xf32> to vector<8x128xf32>
    %c0_15 = arith.constant 0 : index
    %c0_16 = arith.constant 0 : index
    %49 = vector.load %arg4[%c0_15, %c0_16] : memref<8x128xf32, #tpu.memory_space<vmem>>, vector<8x128xf32>
    tpu.vector_store %arg4[%c0_15, %c0_16], %48 {strides = array<i32>} : memref<8x128xf32, #tpu.memory_space<vmem>>, vector<8x128xf32>,
    return
  }
  func.func @transform_0(%arg0: i32) -> (i32, i32) {
    %c0_i32 = arith.constant 0 : i32
    %c0_i32_0 = arith.constant 0 : i32
    return %arg0, %c0_i32 : i32, i32
  }
  func.func @transform_1(%arg0: i32) -> (i32, i32) {
    %c0_i32 = arith.constant 0 : i32
    %c0_i32_0 = arith.constant 0 : i32
    return %arg0, %c0_i32 : i32, i32
  }
  func.func @transform_2(%arg0: i32) -> (i32, i32) {
    %c0_i32 = arith.constant 0 : i32
    %c0_i32_0 = arith.constant 0 : i32
    return %arg0, %c0_i32 : i32, i32
  }
  func.func @transform_3(%arg0: i32) -> (i32, i32) {
    %c0_i32 = arith.constant 0 : i32
    %c0_i32_0 = arith.constant 0 : i32
    return %arg0, %c0_i32 : i32, i32
  }
}

</mosaic_0001>

<llo_original>
// kernel: tpu_custom_call.1
$region0: #{tpu_custom_call.1}
  #allocation0 [shape = 'u32[]', space=smem, size = 0x4, offset = 0x4, fixed_abs, tag = 'smem constant byte address 0x4 - core index']
  #allocation1 [shape = 'u32[72,128]{1,0:T(1,128)}', space=vmem, size = 0x9000, scoped, tag = 'internal scratch']
  %s0 = inlined_call_operand.vmem [shape: f32[8,32], index: 0, kind: input, shape index: {}]
  %s1 = inlined_call_operand.hbm [shape: f32[8,32], index: 1, kind: input, shape index: {}]
  %s2 = inlined_call_operand.vmem [shape: f32[8,1], index: 2, kind: input, shape index: {}]
  %s3 = inlined_call_operand.hbm [shape: f32[8,128], index: 3, kind: output, shape index: {}]
  %s4 = sld [smem:[#allocation0]]
  $region26: #{tpu_custom_call.1} parent=0
    _
  %s6 = ssub.s32 1, %s4
  %s7 = scalar_select 0, %s6, %s4
  $region1: #{tpu_custom_call.1} parent=0
    #allocation2 [shape = 'u8[4096]{0}', space=vmem, size = 0x1000, scoped, tag = 'input window, operand 1, single buffered']
    #allocation3 [shape = 's32[1]{0}', space=sflag, size = 0x4, scoped, tag = 'scoped memory for tpu_custom_call.1']
    #allocation4 [shape = 's32[1]{0}', space=sflag, size = 0x4, scoped, tag = 'scoped memory for tpu_custom_call.1']
    #allocation5 [shape = 'u8[4096]{0}', space=vmem, size = 0x1000, scoped, tag = 'output window, operand 0, single buffered']
    %8 = vsyncpa [#allocation3], 0
    %9 = vsyncpa [#allocation4], 0
    // Predicated region
    $region2: #{tpu_custom_call.1} parent=1 // pred_check
      _
    $region3: #{tpu_custom_call.1} parent=1 // pred_check_branch
      %11 = sbr.rel (0) target = $region5
    $region4: #{tpu_custom_call.1} parent=1 // pred_region
      _
    $region5: #{tpu_custom_call.1} parent=1 // pred_fallthru
      _
    // Predicated region
    $region6: #{tpu_custom_call.1} parent=1 // pred_check
      _
    $region7: #{tpu_custom_call.1} parent=1 // pred_check_branch
      %13 = sbr.rel (0) target = $region9
    $region8: #{tpu_custom_call.1} parent=1 // pred_region
      %15 = vsyncadd [#allocation3], 0
      %s17 = sshll.u32 %s1, 4
      %s18 = int_to_ptr.hbm [resolvable:$true] %s17
      %s19 = sshll.u32 [#allocation2], 4
      %s20 = int_to_ptr.vmem [resolvable:$true] %s19
      %22 = dma.hbm_to_vmem [thread:$0]  %s18, 128, %s20, [#allocation3]
    $region9: #{tpu_custom_call.1} parent=1 // pred_fallthru
      _
    // Predicated region
    $region10: #{tpu_custom_call.1} parent=1 // pred_check
      _
    $region11: #{tpu_custom_call.1} parent=1 // pred_check_branch
      %24 = sbr.rel (0) target = $region13
    $region12: #{tpu_custom_call.1} parent=1 // pred_region
      _
    $region13: #{tpu_custom_call.1} parent=1 // pred_fallthru
      _
    // Predicated region
    $region14: #{tpu_custom_call.1} parent=1 // pred_check
      _
    $region15: #{tpu_custom_call.1} parent=1 // pred_check_branch
      %26 = sbr.rel (0) target = $region17
    $region16: #{tpu_custom_call.1} parent=1 // pred_region
      %28 = dma.done [#allocation3], 128
    $region17: #{tpu_custom_call.1} parent=1 // pred_fallthru
      _
    %v29 = vld [vmem:[%s0] sm:$0xff]
    %v30 = vld [vmem:[#allocation2] sm:$0xff]
    %v31 = vld [vmem:[%s2] sm:$0xff]
    %v32 = vmul.f32 %v29, %v30
    %vm33 = vcmask 261120
    %v34 = vsel %vm33, %v32, 0.0
    %35 = vadd.xlane.f32.xlu0 %v34
    %v36 = vpop.xlane.xlu0 %35
    %v37 = vmul.f32 %v29, %v29
    %v38 = vsel %vm33, %v37, 0.0
    %39 = vadd.xlane.f32.xlu0 %v38
    %v40 = vpop.xlane.xlu0 %39
    %v41 = vmul.f32 %v30, %v30
    %v42 = vsel %vm33, %v41, 0.0
    %43 = vadd.xlane.f32.xlu0 %v42
    %v44 = vpop.xlane.xlu0 %43
    %v45 = vmax.f32 %v40, 1e-24
    %v46 = vrsqrt.pop %v45
    %v47 = vmul.f32 %v46, %v45
    %v48 = vmul.f32 %v47, %v46
    %v49 = vmul.f32 0.5, %v48
    %v50 = vsub.f32 1.5, %v49
    %v51 = vmul.f32 %v46, %v50
    %vm52 = vweird.f32 %v45
    %vm53 = vweird.f32 %v46
    %vm54 = vmor %vm52, %vm53
    %v55 = vsel %vm54, %v46, %v51
    %v56 = vmax.f32 %v44, 1e-24
    %v57 = vrsqrt.pop %v56
    %v58 = vmul.f32 %v57, %v56
    %v59 = vmul.f32 %v58, %v57
    %v60 = vmul.f32 0.5, %v59
    %v61 = vsub.f32 1.5, %v60
    %v62 = vmul.f32 %v57, %v61
    %vm63 = vweird.f32 %v56
    %vm64 = vweird.f32 %v57
    %vm65 = vmor %vm63, %vm64
    %v66 = vsel %vm65, %v57, %v62
    %v67 = vmul.f32 %v36, %v55
    %v68 = vmul.f32 %v67, %v66
    %v69 = vsub.f32 1.0, %v68
    %v70 = vsub.f32 0.5, %v69
    %v71 = vmax.f32 %v70, 0.0
    %v72 = vlaneseq
    %v73 = vshrl.u32 %v72, 7
    %s74 = smul.u32 0, 8
    %v75 = vstv %s74
    %v76 = vadd.s32 %v73, %v75
    %vm77 = vcmp.lt.s32.totalorder %v76, 8
    %v78 = vsel %vm77, 1, 0
    %v79 = vcvt.s32.f32 %v78
    %v80 = vmul.f32 %v31, %v69
    %v81 = vmul.f32 %v80, %v69
    %v82 = vsub.f32 1.0, %v31
    %v83 = vmul.f32 %v82, %v71
    %v84 = vmul.f32 %v83, %v71
    %v85 = vadd.f32 %v81, %v84
    %v86 = vmul.f32 %v79, %v85
    %vm87 = vcmask 7168
    %v88 = vsel %vm87, %v86, 0.0
    %89 = vadd.xlane.f32.xlu0 %v88
    %v90 = vpop.xlane.xlu0 %89
    %v91 = vrot.slane %v90, 4
    %v92 = vadd.f32 %v90, %v91
    %v93 = vrot.slane %v92, 2
    %v94 = vadd.f32 %v92, %v93
    %v95 = vrot.slane %v94, 1
    %v96 = vadd.f32 %v94, %v95
    %s97 = vtos %v96
    %v98 = vstv %s97
    %99 = vst [vmem:[#allocation5] sm:$0xff] %v98
    // Predicated region
    $region18: #{tpu_custom_call.1} parent=1 // pred_check
      _
    $region19: #{tpu_custom_call.1} parent=1 // pred_check_branch
      %101 = sbr.rel (0) target = $region21
    $region20: #{tpu_custom_call.1} parent=1 // pred_region
      %103 = vsyncadd [#allocation4], 0
      %s105 = sshll.u32 [#allocation5], 4
      %s106 = int_to_ptr.vmem [resolvable:$true] %s105
      %s107 = sshll.u32 %s3, 4
      %s108 = int_to_ptr.hbm [resolvable:$true] %s107
      %110 = dma.vmem_to_hbm [thread:$0]  %s106, 128, %s108, [#allocation4]
    $region21: #{tpu_custom_call.1} parent=1 // pred_fallthru
      _
    // Predicated region
    $region22: #{tpu_custom_call.1} parent=1 // pred_check
      _
    $region23: #{tpu_custom_call.1} parent=1 // pred_check_branch
      %112 = sbr.rel (0) target = $region25
    $region24: #{tpu_custom_call.1} parent=1 // pred_region
      %114 = dma.done [#allocation4], 128
    $region25: #{tpu_custom_call.1} parent=1 // pred_fallthru
      _
    %115 = vsyncpa [#allocation3], 1
    %116 = vsyncpa [#allocation4], 1

</llo_original>
